<compile_context>
chip_gen: v7x
topology: tpu7x:2x2x1
jax: 0.10.0
libtpu: 0.0.40
codegen_flags: <defaults>
</compile_context>

<pallas_src>
import jax
import jax.numpy as jnp
from jax.experimental import pallas as pl
from jax.experimental.pallas import tpu as pltpu

EPS = 1e-5  # BatchNorm1d eps


def _round_up(v, m):
    return ((v + m - 1) // m) * m


def _pad2(a, rows, cols):
    return jnp.pad(a, ((0, rows - a.shape[0]), (0, cols - a.shape[1])))


def _fold_bn(w_list, b, gamma, beta, mean, var):
    """Fold eval-mode BatchNorm1d into the preceding Linear (split weights)."""
    scale = gamma / jnp.sqrt(var + EPS)            # [1, H]
    ws = [w * scale for w in w_list]
    bs = (b - mean) * scale + beta
    return ws, bs


# ---------------------------------------------------------------------------
# Kernel 1: per-source-node softmax statistics (online max / sum-of-exp),
#           tiled over edges; m/l are [1, N_pad] accumulators resident in VMEM.
# ---------------------------------------------------------------------------
def _seg_softmax_stats_kernel(xr_ref, xc_ref, rid_ref,
                              wq_ref, bq_ref, wk_ref, bk_ref,
                              m_ref, l_ref):
    neg = jnp.float32(float("-inf"))

    @pl.when(pl.program_id(0) == 0)
    def _init():
        m_ref[...] = jnp.full_like(m_ref, neg)
        l_ref[...] = jnp.zeros_like(l_ref)

    q = jnp.dot(xr_ref[...], wq_ref[...], preferred_element_type=jnp.float32) + bq_ref[...]
    k = jnp.dot(xc_ref[...], wk_ref[...], preferred_element_type=jnp.float32) + bk_ref[...]
    s = jnp.sum(q * k, axis=1, keepdims=True)                         # [tE, 1]

    te = xr_ref.shape[0]
    npad = m_ref.shape[1]
    lane = jax.lax.broadcasted_iota(jnp.int32, (te, npad), 1)
    onehot = rid_ref[...] == lane                                     # [tE, Np]; padded edges (id=-1) all False

    tile_max = jnp.max(jnp.where(onehot, s, neg), axis=0, keepdims=True)   # [1, Np]
    m_old = m_ref[...]
    m_new = jnp.maximum(m_old, tile_max)
    # rescale factor for the running sum (guard -inf - -inf -> nan for untouched nodes)
    alpha = jnp.where(m_old == neg, 0.0, jnp.exp(m_old - m_new))      # [1, Np]

    m_edge = jnp.sum(jnp.where(onehot, m_new, 0.0), axis=1, keepdims=True)  # m_new[row[e]]  [tE, 1]
    p = jnp.exp(s - m_edge)                                           # [tE, 1]
    tile_sum = jnp.sum(jnp.where(onehot, p, 0.0), axis=0, keepdims=True)    # [1, Np]

    l_ref[...] = alpha * l_ref[...] + tile_sum
    m_ref[...] = m_new


# ---------------------------------------------------------------------------
# Kernel 2 (fused): attention weights + node_mlp_1 over edges + scatter_add
#                   into a VMEM [N_pad, H_pad] accumulator + node_mlp_2.
# ---------------------------------------------------------------------------
def _fused_edge_node_kernel(xr_ref, xc_ref, ea_ref, rid_ref, cid_ref,
                            m_ref, l_ref,
                            wq_ref, bq_ref, wk_ref, bk_ref,
                            w1x_ref, w1e_ref, b1_ref, w1o_ref, b1o_ref,
                            xn_ref, w2x_ref, w2a_ref, b2_ref, w2o_ref, b2o_ref,
                            attn_ref, out_ref,
                            agg_ref):
    i = pl.program_id(0)

    @pl.when(i == 0)
    def _init():
        agg_ref[...] = jnp.zeros_like(agg_ref)
        out_ref[...] = jnp.zeros_like(out_ref)

    # --- recompute attention scores for this edge tile (cheap MXU work) ---
    q = jnp.dot(xr_ref[...], wq_ref[...], preferred_element_type=jnp.float32) + bq_ref[...]
    k = jnp.dot(xc_ref[...], wk_ref[...], preferred_element_type=jnp.float32) + bk_ref[...]
    s = jnp.sum(q * k, axis=1, keepdims=True)                         # [tE, 1]

    te = xr_ref.shape[0]
    npad = m_ref.shape[1]
    lane = jax.lax.broadcasted_iota(jnp.int32, (te, npad), 1)
    rid = rid_ref[...]
    oh_row = rid == lane                                              # [tE, Np]
    oh_col = cid_ref[...] == lane                                     # [tE, Np]

    # gather per-edge softmax statistics of the source node
    m_e = jnp.sum(jnp.where(oh_row, m_ref[...], 0.0), axis=1, keepdims=True)  # [tE, 1]
    l_e = jnp.sum(jnp.where(oh_row, l_ref[...], 0.0), axis=1, keepdims=True)  # [tE, 1]
    attn = jnp.exp(s - m_e) * pl.reciprocal(l_e, approx=False)        # scatter_softmax (dropout=Identity)
    attn = jnp.where(rid >= 0, attn, 0.0)                             # zero padded edges (avoid inf into scatter)

    # --- node_mlp_1 over edges (BatchNorm folded into the first Linear) ---
    h = (jnp.dot(xr_ref[...], w1x_ref[...], preferred_element_type=jnp.float32)
         + jnp.dot(ea_ref[...], w1e_ref[...], preferred_element_type=jnp.float32)
         + b1_ref[...])
    h = jnp.maximum(h, 0.0)
    h = jnp.dot(h, w1o_ref[...], preferred_element_type=jnp.float32) + b1o_ref[...]
    h = h * attn                                                      # attention weighting   [tE, Hp]

    # --- scatter_add by destination node: agg += onehot_col^T @ h  (MXU) ---
    agg_ref[...] += jax.lax.dot_general(
        oh_col.astype(jnp.float32), h,
        dimension_numbers=(((0,), (0,)), ((), ())),
        preferred_element_type=jnp.float32)

    # lane-dense attention output: value broadcast across 128 lanes, wrapper keeps column 0
    attn_ref[...] = jnp.broadcast_to(attn, attn_ref.shape)

    # --- node_mlp_2 over all nodes, once, after the last edge tile ---
    @pl.when(i == pl.num_programs(0) - 1)
    def _finalize():
        h2 = (jnp.dot(xn_ref[...], w2x_ref[...], preferred_element_type=jnp.float32)
              + jnp.dot(agg_ref[...], w2a_ref[...], preferred_element_type=jnp.float32)
              + b2_ref[...])
        h2 = jnp.maximum(h2, 0.0)
        out_ref[...] = (jnp.dot(h2, w2o_ref[...], preferred_element_type=jnp.float32)
                        + b2o_ref[...])


# ---------------------------------------------------------------------------
# Wrapper (layout plumbing: BN folding, padding, gathers, BlockSpecs)
# ---------------------------------------------------------------------------
def node_model_forward(x, edge_index, edge_attr, u, batch, params):
    del u, batch  # unused by NodeModel.forward compute (matches reference)
    f32 = jnp.float32
    N, D = x.shape
    E = edge_index.shape[1]
    De = edge_attr.shape[1]
    H = params["w1o"].shape[1]

    # fold eval-mode BatchNorm into the first Linear of each MLP
    (w1x, w1e), b1 = _fold_bn([params["w1x"], params["w1e"]], params["b1"],
                              params["g1"], params["beta1"], params["m1"], params["v1"])
    (w2x, w2a), b2 = _fold_bn([params["w2x"], params["w2a"]], params["b2"],
                              params["g2"], params["beta2"], params["m2"], params["v2"])

    # lane/sublane aligned padded layout
    DP = _round_up(D, 128)
    EDP = _round_up(De, 128)
    HP = _round_up(H, 128)
    NP = _round_up(N, 128)                       # nodes live on the lane axis of segment ops
    # keep the transient [TE, NP] one-hot tiles small relative to VMEM
    te_cap = max(8, (((2 * 1024 * 1024) // (NP * 4)) // 8) * 8)
    TE = min(512, te_cap, _round_up(E, 8))
    EPAD = _round_up(E, TE)
    n_tiles = EPAD // TE

    x_p = _pad2(x.astype(f32), NP, DP)
    row = edge_index[0].astype(jnp.int32)
    col = edge_index[1].astype(jnp.int32)

    # node->edge gather is plain layout plumbing (XLA gather); kernels only see O(E*D) data
    x_row = jnp.pad(jnp.take(x_p, row, axis=0), ((0, EPAD - E), (0, 0)))   # [EPAD, DP]
    x_col = jnp.pad(jnp.take(x_p, col, axis=0), ((0, EPAD - E), (0, 0)))   # [EPAD, DP]
    ea_p = _pad2(edge_attr.astype(f32), EPAD, EDP)

    rid = jnp.pad(row, (0, EPAD - E), constant_values=-1).reshape(EPAD, 1)
    cid = jnp.pad(col, (0, EPAD - E), constant_values=-1).reshape(EPAD, 1)

    wq = _pad2(params["wq"].astype(f32), DP, HP);  bq = _pad2(params["bq"].astype(f32), 1, HP)
    wk = _pad2(params["wk"].astype(f32), DP, HP);  bk = _pad2(params["bk"].astype(f32), 1, HP)
    w1x_p = _pad2(w1x, DP, HP); w1e_p = _pad2(w1e, EDP, HP); b1_p = _pad2(b1, 1, HP)
    w1o_p = _pad2(params["w1o"].astype(f32), HP, HP); b1o_p = _pad2(params["b1o"].astype(f32), 1, HP)
    w2x_p = _pad2(w2x, DP, HP); w2a_p = _pad2(w2a, HP, HP); b2_p = _pad2(b2, 1, HP)
    w2o_p = _pad2(params["w2o"].astype(f32), HP, DP); b2o_p = _pad2(params["b2o"].astype(f32), 1, DP)

    edge_spec = lambda c: pl.BlockSpec((TE, c), lambda i: (i, 0))
    const_spec = lambda r, c: pl.BlockSpec((r, c), lambda i: (0, 0))

    cp = pltpu.CompilerParams(dimension_semantics=("arbitrary",),
                              vmem_limit_bytes=48 * 1024 * 1024)

    # ---- pass 1: per-source-node softmax statistics ----
    m_stat, l_stat = pl.pallas_call(
        _seg_softmax_stats_kernel,
        grid=(n_tiles,),
        in_specs=[edge_spec(DP), edge_spec(DP), edge_spec(1),
                  const_spec(DP, HP), const_spec(1, HP),
                  const_spec(DP, HP), const_spec(1, HP)],
        out_specs=[const_spec(1, NP), const_spec(1, NP)],
        out_shape=[jax.ShapeDtypeStruct((1, NP), f32),
                   jax.ShapeDtypeStruct((1, NP), f32)],
        compiler_params=cp,
    )(x_row, x_col, rid, wq, bq, wk, bk)

    # ---- pass 2: attention + edge MLP + scatter_add + node MLP (fused) ----
    attn_p, updated_p = pl.pallas_call(
        _fused_edge_node_kernel,
        grid=(n_tiles,),
        in_specs=[edge_spec(DP), edge_spec(DP), edge_spec(EDP),
                  edge_spec(1), edge_spec(1),
                  const_spec(1, NP), const_spec(1, NP),
                  const_spec(DP, HP), const_spec(1, HP),
                  const_spec(DP, HP), const_spec(1, HP),
                  const_spec(DP, HP), const_spec(EDP, HP), const_spec(1, HP),
                  const_spec(HP, HP), const_spec(1, HP),
                  const_spec(NP, DP),
                  const_spec(DP, HP), const_spec(HP, HP), const_spec(1, HP),
                  const_spec(HP, DP), const_spec(1, DP)],
        out_specs=[pl.BlockSpec((TE, 128), lambda i: (i, 0)),
                   const_spec(NP, DP)],
        out_shape=[jax.ShapeDtypeStruct((EPAD, 128), f32),
                   jax.ShapeDtypeStruct((NP, DP), f32)],
        scratch_shapes=[pltpu.VMEM((NP, HP), f32)],
        compiler_params=cp,
    )(x_row, x_col, ea_p, rid, cid, m_stat, l_stat,
      wq, bq, wk, bk,
      w1x_p, w1e_p, b1_p, w1o_p, b1o_p,
      x_p, w2x_p, w2a_p, b2_p, w2o_p, b2o_p)

    return updated_p[:N, :D], attn_p[:E, 0]   # (updated_nodes [N, D], attentions [E])


# ---------------------------------------------------------------------------
# Pure-JAX reference (for an in-script sanity check against the kernels)
# ---------------------------------------------------------------------------
def _reference_forward(x, edge_index, edge_attr, params):
    row, col = edge_index[0], edge_index[1]
    N = x.shape[0]

    def bn(h, g, beta, mean, var):
        return (h - mean) / jnp.sqrt(var + EPS) * g + beta

    q = x @ params["wq"] + params["bq"]
    k = x @ params["wk"] + params["bk"]
    s = jnp.sum(q[row] * k[col], axis=1)
    seg_max = jax.ops.segment_max(s, row, num_segments=N)
    e = jnp.exp(s - seg_max[row])
    seg_sum = jax.ops.segment_sum(e, row, num_segments=N)
    attn = e / seg_sum[row]

    h = jnp.concatenate([x[row], edge_attr], axis=1)
    h = h @ jnp.concatenate([params["w1x"], params["w1e"]], axis=0) + params["b1"]
    h = jnp.maximum(bn(h, params["g1"], params["beta1"], params["m1"], params["v1"]), 0.0)
    h = h @ params["w1o"] + params["b1o"]
    h = h * attn[:, None]
    agg = jax.ops.segment_sum(h, col, num_segments=N)

    h2 = jnp.concatenate([x, agg], axis=1)
    h2 = h2 @ jnp.concatenate([params["w2x"], params["w2a"]], axis=0) + params["b2"]
    h2 = jnp.maximum(bn(h2, params["g2"], params["beta2"], params["m2"], params["v2"]), 0.0)
    out = h2 @ params["w2o"] + params["b2o"]
    return out, attn


if __name__ == "__main__":
    key = jax.random.PRNGKey(0)
    N, E = 16, 32
    node_dim, edge_dim, hidden_dim = 16, 8, 32
    keys = jax.random.split(key, 12)

    def xavier(k, fan_in, fan_out):
        lim = (6.0 / (fan_in + fan_out)) ** 0.5
        return jax.random.uniform(k, (fan_in, fan_out), jnp.float32, -lim, lim)

    params = dict(
        # NodeAttention (attn_dim = hidden_dim)
        wq=xavier(keys[0], node_dim, hidden_dim), bq=jnp.zeros((1, hidden_dim), jnp.float32),
        wk=xavier(keys[1], node_dim, hidden_dim), bk=jnp.zeros((1, hidden_dim), jnp.float32),
        # node_mlp_1: Linear(node_dim+edge_dim, H) -> BN -> ReLU -> Linear(H, H)
        w1x=xavier(keys[2], node_dim, hidden_dim),
        w1e=xavier(keys[3], edge_dim, hidden_dim),
        b1=jnp.full((1, hidden_dim), 0.01, jnp.float32),
        g1=jnp.ones((1, hidden_dim), jnp.float32), beta1=jnp.zeros((1, hidden_dim), jnp.float32),
        m1=jnp.zeros((1, hidden_dim), jnp.float32), v1=jnp.ones((1, hidden_dim), jnp.float32),
        w1o=xavier(keys[4], hidden_dim, hidden_dim),
        b1o=jnp.full((1, hidden_dim), 0.01, jnp.float32),
        # node_mlp_2: Linear(node_dim+H, H) -> BN -> ReLU -> Linear(H, node_dim)
        w2x=xavier(keys[5], node_dim, hidden_dim),
        w2a=xavier(keys[6], hidden_dim, hidden_dim),
        b2=jnp.full((1, hidden_dim), 0.01, jnp.float32),
        g2=jnp.ones((1, hidden_dim), jnp.float32), beta2=jnp.zeros((1, hidden_dim), jnp.float32),
        m2=jnp.zeros((1, hidden_dim), jnp.float32), v2=jnp.ones((1, hidden_dim), jnp.float32),
        w2o=xavier(keys[7], hidden_dim, node_dim),
        b2o=jnp.full((1, node_dim), 0.01, jnp.float32),
    )

    x = jax.random.normal(keys[8], (N, node_dim), jnp.float32)
    edge_attr = jax.random.normal(keys[9], (E, edge_dim), jnp.float32)
    row = jax.random.randint(keys[10], (E,), 0, N)
    col = jax.random.randint(keys[11], (E,), 0, N)
    edge_index = jnp.stack([row, col], axis=0)
    u = jnp.zeros((1, 4), jnp.float32)        # unused global features
    batch = jnp.zeros((N,), jnp.int32)        # unused batch assignment

    updated_nodes, attentions = node_model_forward(x, edge_index, edge_attr, u, batch, params)
    jax.block_until_ready((updated_nodes, attentions))
    assert updated_nodes.shape == (N, node_dim) and attentions.shape == (E,)
    assert bool(jnp.all(jnp.isfinite(updated_nodes))) and bool(jnp.all(jnp.isfinite(attentions)))

    ref_nodes, ref_attn = _reference_forward(x, edge_index, edge_attr, params)
    assert jnp.allclose(updated_nodes, ref_nodes, rtol=1e-3, atol=1e-3), "node output mismatch"
    assert jnp.allclose(attentions, ref_attn, rtol=1e-3, atol=1e-3), "attention mismatch"
    print("KERNEL_OK")
</pallas_src>

<mosaic_0001>
module attributes {stable_mosaic.version = 11 : i64} {
  func.func @_seg_softmax_stats_kernel(%arg0: i32, %arg1: memref<32x128xf32, #tpu.memory_space<vmem>>, %arg2: memref<32x128xf32, #tpu.memory_space<vmem>>, %arg3: memref<32x1xi32, #tpu.memory_space<vmem>>, %arg4: memref<128x128xf32, #tpu.memory_space<vmem>>, %arg5: memref<1x128xf32, #tpu.memory_space<vmem>>, %arg6: memref<128x128xf32, #tpu.memory_space<vmem>>, %arg7: memref<1x128xf32, #tpu.memory_space<vmem>>, %arg8: memref<1x128xf32, #tpu.memory_space<vmem>>, %arg9: memref<1x128xf32, #tpu.memory_space<vmem>>) attributes {dimension_semantics = [#tpu.dimension_semantics<arbitrary>], iteration_bounds = array<i64: 1>, scalar_prefetch = 0 : i64, scratch_operands = 0 : i64, tpu.core_type = #tpu.core_type<tc>, window_params = [{transform_indices = @transform_0, window_bounds = array<i64: 32, 128>}, {transform_indices = @transform_1, window_bounds = array<i64: 32, 128>}, {transform_indices = @transform_2, window_bounds = array<i64: 32, 1>}, {pipeline_mode = #tpu.pipeline_mode<synchronous>, transform_indices = @transform_3, window_bounds = array<i64: 128, 128>}, {pipeline_mode = #tpu.pipeline_mode<synchronous>, transform_indices = @transform_4, window_bounds = array<i64: 1, 128>}, {pipeline_mode = #tpu.pipeline_mode<synchronous>, transform_indices = @transform_5, window_bounds = array<i64: 128, 128>}, {pipeline_mode = #tpu.pipeline_mode<synchronous>, transform_indices = @transform_6, window_bounds = array<i64: 1, 128>}, {pipeline_mode = #tpu.pipeline_mode<synchronous>, transform_indices = @transform_7, window_bounds = array<i64: 1, 128>}, {pipeline_mode = #tpu.pipeline_mode<synchronous>, transform_indices = @transform_8, window_bounds = array<i64: 1, 128>}]} {
    %c0_i32 = arith.constant 0 : i32
    %0 = arith.cmpi eq, %arg0, %c0_i32 : i32
    %1 = arith.extui %0 : i1 to i32
    %cst = arith.constant 0xFF800000 : f32
    %c0_i32_0 = arith.constant 0 : i32
    %2 = arith.cmpi ne, %1, %c0_i32_0 : i32
    scf.if %2 {
      %55 = vector.broadcast %cst : f32 to vector<1x128xf32>
      %c0_33 = arith.constant 0 : index
      %c0_34 = arith.constant 0 : index
      %56 = vector.load %arg8[%c0_33, %c0_34] : memref<1x128xf32, #tpu.memory_space<vmem>>, vector<1x128xf32>
      tpu.vector_store %arg8[%c0_33, %c0_34], %55 {strides = array<i32>} : memref<1x128xf32, #tpu.memory_space<vmem>>, vector<1x128xf32>,
      %cst_35 = arith.constant 0.000000e+00 : f32
      %57 = vector.broadcast %cst_35 : f32 to vector<1x128xf32>
      %c0_36 = arith.constant 0 : index
      %c0_37 = arith.constant 0 : index
      %58 = vector.load %arg9[%c0_36, %c0_37] : memref<1x128xf32, #tpu.memory_space<vmem>>, vector<1x128xf32>
      tpu.vector_store %arg9[%c0_36, %c0_37], %57 {strides = array<i32>} : memref<1x128xf32, #tpu.memory_space<vmem>>, vector<1x128xf32>,
    } else {
    }
    %c0 = arith.constant 0 : index
    %c0_1 = arith.constant 0 : index
    %3 = vector.load %arg1[%c0, %c0_1] : memref<32x128xf32, #tpu.memory_space<vmem>>, vector<32x128xf32>
    %c0_2 = arith.constant 0 : index
    %c0_3 = arith.constant 0 : index
    %4 = vector.load %arg4[%c0_2, %c0_3] : memref<128x128xf32, #tpu.memory_space<vmem>>, vector<128x128xf32>
    %cst_4 = arith.constant dense<0.000000e+00> : vector<32x128xf32>
    %5 = tpu.matmul %3, %4, %cst_4 {dimension_numbers = #tpu.dot_dimension_numbers<[1], [0], [0], [1], [0, 0, 1, 1], [], []>} : vector<32x128xf32>, vector<128x128xf32>, vector<32x128xf32> -> vector<32x128xf32>
    %c0_5 = arith.constant 0 : index
    %c0_6 = arith.constant 0 : index
    %6 = vector.load %arg5[%c0_5, %c0_6] : memref<1x128xf32, #tpu.memory_space<vmem>>, vector<1x128xf32>
    %7 = vector.broadcast %6 : vector<1x128xf32> to vector<32x128xf32>
    %8 = arith.addf %5, %7 : vector<32x128xf32>
    %c0_7 = arith.constant 0 : index
    %c0_8 = arith.constant 0 : index
    %9 = vector.load %arg2[%c0_7, %c0_8] : memref<32x128xf32, #tpu.memory_space<vmem>>, vector<32x128xf32>
    %c0_9 = arith.constant 0 : index
    %c0_10 = arith.constant 0 : index
    %10 = vector.load %arg6[%c0_9, %c0_10] : memref<128x128xf32, #tpu.memory_space<vmem>>, vector<128x128xf32>
    %cst_11 = arith.constant dense<0.000000e+00> : vector<32x128xf32>
    %11 = tpu.matmul %9, %10, %cst_11 {dimension_numbers = #tpu.dot_dimension_numbers<[1], [0], [0], [1], [0, 0, 1, 1], [], []>} : vector<32x128xf32>, vector<128x128xf32>, vector<32x128xf32> -> vector<32x128xf32>
    %c0_12 = arith.constant 0 : index
    %c0_13 = arith.constant 0 : index
    %12 = vector.load %arg7[%c0_12, %c0_13] : memref<1x128xf32, #tpu.memory_space<vmem>>, vector<1x128xf32>
    %13 = vector.broadcast %12 : vector<1x128xf32> to vector<32x128xf32>
    %14 = arith.addf %11, %13 : vector<32x128xf32>
    %15 = arith.mulf %8, %14 : vector<32x128xf32>
    %cst_14 = arith.constant dense<0.000000e+00> : vector<32xf32>
    %16 = vector.multi_reduction <add>, %15, %cst_14 [1] : vector<32x128xf32> to vector<32xf32>
    %17 = vector.shape_cast %16 : vector<32xf32> to vector<32x1xf32>
    %18 = tpu.iota {dimensions = array<i32: 1>} : vector<32x128xi32>
    %c0_15 = arith.constant 0 : index
    %c0_16 = arith.constant 0 : index
    %19 = vector.load %arg3[%c0_15, %c0_16] : memref<32x1xi32, #tpu.memory_space<vmem>>, vector<32x1xi32>
    %20 = vector.broadcast %19 : vector<32x1xi32> to vector<32x128xi32>
    %21 = arith.cmpi eq, %20, %18 : vector<32x128xi32>
    %cst_17 = arith.constant 0xFF800000 : f32
    %22 = vector.shape_cast %17 : vector<32x1xf32> to vector<32x1xf32>
    %23 = vector.broadcast %22 : vector<32x1xf32> to vector<32x128xf32>
    %24 = vector.broadcast %cst_17 : f32 to vector<32x128xf32>
    %25 = arith.select %21, %23, %24 : vector<32x128xi1>, vector<32x128xf32>
    %cst_18 = arith.constant dense<0xFF800000> : vector<128xf32>
    %26 = vector.multi_reduction <maximumf>, %25, %cst_18 [0] : vector<32x128xf32> to vector<128xf32>
    %27 = vector.shape_cast %26 : vector<128xf32> to vector<1x128xf32>
    %c0_19 = arith.constant 0 : index
    %c0_20 = arith.constant 0 : index
    %28 = vector.load %arg8[%c0_19, %c0_20] : memref<1x128xf32, #tpu.memory_space<vmem>>, vector<1x128xf32>
    %29 = arith.maximumf %28, %27 : vector<1x128xf32>
    %cst_21 = arith.constant 0xFF800000 : f32
    %30 = vector.broadcast %cst_21 : f32 to vector<1x128xf32>
    %31 = arith.cmpf oeq, %28, %30 : vector<1x128xf32>
    %32 = arith.subf %28, %29 : vector<1x128xf32>
    %33 = math.exp %32 : vector<1x128xf32>
    %cst_22 = arith.constant 0.000000e+00 : f32
    %34 = vector.broadcast %cst_22 : f32 to vector<1x128xf32>
    %35 = arith.select %31, %34, %33 : vector<1x128xi1>, vector<1x128xf32>
    %cst_23 = arith.constant 0.000000e+00 : f32
    %36 = vector.shape_cast %29 : vector<1x128xf32> to vector<1x128xf32>
    %37 = vector.broadcast %36 : vector<1x128xf32> to vector<32x128xf32>
    %38 = vector.broadcast %cst_23 : f32 to vector<32x128xf32>
    %39 = arith.select %21, %37, %38 : vector<32x128xi1>, vector<32x128xf32>
    %cst_24 = arith.constant dense<0.000000e+00> : vector<32xf32>
    %40 = vector.multi_reduction <add>, %39, %cst_24 [1] : vector<32x128xf32> to vector<32xf32>
    %41 = vector.shape_cast %40 : vector<32xf32> to vector<32x1xf32>
    %42 = arith.subf %17, %41 : vector<32x1xf32>
    %43 = math.exp %42 : vector<32x1xf32>
    %cst_25 = arith.constant 0.000000e+00 : f32
    %44 = vector.shape_cast %43 : vector<32x1xf32> to vector<32x1xf32>
    %45 = vector.broadcast %44 : vector<32x1xf32> to vector<32x128xf32>
    %46 = vector.broadcast %cst_25 : f32 to vector<32x128xf32>
    %47 = arith.select %21, %45, %46 : vector<32x128xi1>, vector<32x128xf32>
    %cst_26 = arith.constant dense<0.000000e+00> : vector<128xf32>
    %48 = vector.multi_reduction <add>, %47, %cst_26 [0] : vector<32x128xf32> to vector<128xf32>
    %49 = vector.shape_cast %48 : vector<128xf32> to vector<1x128xf32>
    %c0_27 = arith.constant 0 : index
    %c0_28 = arith.constant 0 : index
    %50 = vector.load %arg9[%c0_27, %c0_28] : memref<1x128xf32, #tpu.memory_space<vmem>>, vector<1x128xf32>
    %51 = arith.mulf %35, %50 : vector<1x128xf32>
    %52 = arith.addf %51, %49 : vector<1x128xf32>
    %c0_29 = arith.constant 0 : index
    %c0_30 = arith.constant 0 : index
    %53 = vector.load %arg9[%c0_29, %c0_30] : memref<1x128xf32, #tpu.memory_space<vmem>>, vector<1x128xf32>
    tpu.vector_store %arg9[%c0_29, %c0_30], %52 {strides = array<i32>} : memref<1x128xf32, #tpu.memory_space<vmem>>, vector<1x128xf32>,
    %c0_31 = arith.constant 0 : index
    %c0_32 = arith.constant 0 : index
    %54 = vector.load %arg8[%c0_31, %c0_32] : memref<1x128xf32, #tpu.memory_space<vmem>>, vector<1x128xf32>
    tpu.vector_store %arg8[%c0_31, %c0_32], %29 {strides = array<i32>} : memref<1x128xf32, #tpu.memory_space<vmem>>, vector<1x128xf32>,
    return
  }
  func.func @transform_0(%arg0: i32) -> (i32, i32) {
    %c0_i32 = arith.constant 0 : i32
    %c0_i32_0 = arith.constant 0 : i32
    return %arg0, %c0_i32 : i32, i32
  }
  func.func @transform_1(%arg0: i32) -> (i32, i32) {
    %c0_i32 = arith.constant 0 : i32
    %c0_i32_0 = arith.constant 0 : i32
    return %arg0, %c0_i32 : i32, i32
  }
  func.func @transform_2(%arg0: i32) -> (i32, i32) {
    %c0_i32 = arith.constant 0 : i32
    %c0_i32_0 = arith.constant 0 : i32
    return %arg0, %c0_i32 : i32, i32
  }
  func.func @transform_3(%arg0: i32) -> (i32, i32) {
    %c0_i32 = arith.constant 0 : i32
    %c0_i32_0 = arith.constant 0 : i32
    %c0_i32_1 = arith.constant 0 : i32
    return %c0_i32, %c0_i32_0 : i32, i32
  }
  func.func @transform_4(%arg0: i32) -> (i32, i32) {
    %c0_i32 = arith.constant 0 : i32
    %c0_i32_0 = arith.constant 0 : i32
    %c0_i32_1 = arith.constant 0 : i32
    return %c0_i32, %c0_i32_0 : i32, i32
  }
  func.func @transform_5(%arg0: i32) -> (i32, i32) {
    %c0_i32 = arith.constant 0 : i32
    %c0_i32_0 = arith.constant 0 : i32
    %c0_i32_1 = arith.constant 0 : i32
    return %c0_i32, %c0_i32_0 : i32, i32
  }
  func.func @transform_6(%arg0: i32) -> (i32, i32) {
    %c0_i32 = arith.constant 0 : i32
    %c0_i32_0 = arith.constant 0 : i32
    %c0_i32_1 = arith.constant 0 : i32
    return %c0_i32, %c0_i32_0 : i32, i32
  }
  func.func @transform_7(%arg0: i32) -> (i32, i32) {
    %c0_i32 = arith.constant 0 : i32
    %c0_i32_0 = arith.constant 0 : i32
    %c0_i32_1 = arith.constant 0 : i32
    return %c0_i32, %c0_i32_0 : i32, i32
  }
  func.func @transform_8(%arg0: i32) -> (i32, i32) {
    %c0_i32 = arith.constant 0 : i32
    %c0_i32_0 = arith.constant 0 : i32
    %c0_i32_1 = arith.constant 0 : i32
    return %c0_i32, %c0_i32_0 : i32, i32
  }
}

</mosaic_0001>

<llo_original>
// kernel: tpu_custom_call.1
$region0: #{tpu_custom_call.1}
  #allocation0 [shape = 'u32[]', space=smem, size = 0x4, offset = 0x4, fixed_abs, tag = 'smem constant byte address 0x4 - core index']
  #allocation1 [shape = 'u32[144,128]{1,0:T(1,128)}', space=vmem, size = 0x12000, scoped, tag = 'internal scratch']
  %s0 = inlined_call_operand.vmem [shape: f32[32,128], index: 0, kind: input, shape index: {}]
  %s1 = inlined_call_operand.hbm [shape: f32[32,128], index: 1, kind: input, shape index: {}]
  %s2 = inlined_call_operand.vmem [shape: s32[32,1], index: 2, kind: input, shape index: {}]
  %s3 = inlined_call_operand.hbm [shape: f32[128,128], index: 3, kind: input, shape index: {}]
  %s4 = inlined_call_operand.vmem [shape: f32[1,128], index: 4, kind: input, shape index: {}]
  %s5 = inlined_call_operand.hbm [shape: f32[128,128], index: 5, kind: input, shape index: {}]
  %s6 = inlined_call_operand.vmem [shape: f32[1,128], index: 6, kind: input, shape index: {}]
  %s7 = inlined_call_operand.hbm [shape: f32[1,128], index: 7, kind: output, shape index: {0}]
  %s8 = inlined_call_operand.hbm [shape: f32[1,128], index: 8, kind: output, shape index: {1}]
  %9 = xla_tuple %s7, %s8
  %s10 = sld [smem:[#allocation0]]
  $region62: #{tpu_custom_call.1} parent=0
    _
  %s12 = ssub.s32 1, %s10
  %s13 = scalar_select 0, %s12, %s10
  $region1: #{tpu_custom_call.1} parent=0
    #allocation2 [shape = 'u8[16384]{0}', space=vmem, size = 0x4000, scoped, tag = 'input window, operand 1, single buffered']
    #allocation3 [shape = 's32[1]{0}', space=sflag, size = 0x4, scoped, tag = 'scoped memory for tpu_custom_call.1']
    #allocation4 [shape = 's32[1]{0}', space=sflag, size = 0x4, scoped, tag = 'scoped memory for tpu_custom_call.1']
    #allocation5 [shape = 'u8[65536]{0}', space=vmem, size = 0x10000, scoped, tag = 'input window, operand 3, single buffered']
    #allocation6 [shape = 's32[1]{0}', space=sflag, size = 0x4, scoped, tag = 'scoped memory for tpu_custom_call.1']
    #allocation7 [shape = 'u8[65536]{0}', space=vmem, size = 0x10000, scoped, tag = 'input window, operand 5, single buffered']
    #allocation8 [shape = 'u8[512]{0}', space=vmem, size = 0x400, scoped, tag = 'output window, operand 0, single buffered']
    #allocation9 [shape = 'u8[512]{0}', space=vmem, size = 0x400, scoped, tag = 'output window, operand 1, single buffered']
    #allocation10 [shape = 's32[1]{0}', space=sflag, size = 0x4, scoped, tag = 'scoped memory for tpu_custom_call.1']
    %14 = vsyncpa [#allocation3], 0
    %15 = vsyncpa [#allocation6], 0
    %16 = vsyncpa [#allocation4], 0
    %17 = vsyncpa [#allocation10], 0
    // Predicated region
    $region2: #{tpu_custom_call.1} parent=1 // pred_check
      _
    $region3: #{tpu_custom_call.1} parent=1 // pred_check_branch
      %19 = sbr.rel (0) target = $region5
    $region4: #{tpu_custom_call.1} parent=1 // pred_region
      _
    $region5: #{tpu_custom_call.1} parent=1 // pred_fallthru
      _
    // Predicated region
    $region6: #{tpu_custom_call.1} parent=1 // pred_check
      _
    $region7: #{tpu_custom_call.1} parent=1 // pred_check_branch
      %21 = sbr.rel (0) target = $region9
    $region8: #{tpu_custom_call.1} parent=1 // pred_region
      %s23 = ssub.s32 512, 512
      %24 = vsyncadd [#allocation3], %s23
      %s25 = sshll.u32 [#allocation2], 4
      %s26 = int_to_ptr.vmem [resolvable:$true] %s25
      %31 = dma.hbm_to_vmem [thread:$0]  %s1, 512, %s26, [#allocation3], 128, 128, 8
    $region9: #{tpu_custom_call.1} parent=1 // pred_fallthru
      _
    // Predicated region
    $region10: #{tpu_custom_call.1} parent=1 // pred_check
      _
    $region11: #{tpu_custom_call.1} parent=1 // pred_check_branch
      %33 = sbr.rel (0) target = $region13
    $region12: #{tpu_custom_call.1} parent=1 // pred_region
      _
    $region13: #{tpu_custom_call.1} parent=1 // pred_fallthru
      _
    // Predicated region
    $region14: #{tpu_custom_call.1} parent=1 // pred_check
      _
    $region15: #{tpu_custom_call.1} parent=1 // pred_check_branch
      %35 = sbr.rel (0) target = $region17
    $region16: #{tpu_custom_call.1} parent=1 // pred_region
      %s37 = ssub.s32 2048, 2048
      %38 = vsyncadd [#allocation6], %s37
      %s39 = sshll.u32 [#allocation5], 4
      %s40 = int_to_ptr.vmem [resolvable:$true] %s39
      %45 = dma.hbm_to_vmem [thread:$0]  %s3, 2048, %s40, [#allocation6], 128, 128, 8
    $region17: #{tpu_custom_call.1} parent=1 // pred_fallthru
      _
    // Predicated region
    $region18: #{tpu_custom_call.1} parent=1 // pred_check
      _
    $region19: #{tpu_custom_call.1} parent=1 // pred_check_branch
      %47 = sbr.rel (0) target = $region21
    $region20: #{tpu_custom_call.1} parent=1 // pred_region
      _
    $region21: #{tpu_custom_call.1} parent=1 // pred_fallthru
      _
    // Predicated region
    $region22: #{tpu_custom_call.1} parent=1 // pred_check
      _
    $region23: #{tpu_custom_call.1} parent=1 // pred_check_branch
      %49 = sbr.rel (0) target = $region25
    $region24: #{tpu_custom_call.1} parent=1 // pred_region
      %s51 = ssub.s32 2048, 2048
      %52 = vsyncadd [#allocation6], %s51
      %s53 = sshll.u32 [#allocation7], 4
      %s54 = int_to_ptr.vmem [resolvable:$true] %s53
      %59 = dma.hbm_to_vmem [thread:$0]  %s5, 2048, %s54, [#allocation6], 128, 128, 8
    $region25: #{tpu_custom_call.1} parent=1 // pred_fallthru
      _
    // Predicated region
    $region26: #{tpu_custom_call.1} parent=1 // pred_check
      _
    $region27: #{tpu_custom_call.1} parent=1 // pred_check_branch
      %61 = sbr.rel (0) target = $region29
    $region28: #{tpu_custom_call.1} parent=1 // pred_region
      _
    $region29: #{tpu_custom_call.1} parent=1 // pred_fallthru
      _
    // Predicated region
    $region30: #{tpu_custom_call.1} parent=1 // pred_check
      _
    $region31: #{tpu_custom_call.1} parent=1 // pred_check_branch
      %63 = sbr.rel (0) target = $region33
    $region32: #{tpu_custom_call.1} parent=1 // pred_region
      %64 = dma.done [#allocation3], 512
    $region33: #{tpu_custom_call.1} parent=1 // pred_fallthru
      _
    // Predicated region
    $region34: #{tpu_custom_call.1} parent=1 // pred_check
      _
    $region35: #{tpu_custom_call.1} parent=1 // pred_check_branch
      %66 = sbr.rel (0) target = $region37
    $region36: #{tpu_custom_call.1} parent=1 // pred_region
      %67 = dma.done [#allocation6], 2048
    $region37: #{tpu_custom_call.1} parent=1 // pred_fallthru
      _
    // Predicated region
    $region38: #{tpu_custom_call.1} parent=1 // pred_check
      _
    $region39: #{tpu_custom_call.1} parent=1 // pred_check_branch
      %69 = sbr.rel (0) target = $region41
    $region40: #{tpu_custom_call.1} parent=1 // pred_region
      %70 = dma.done [#allocation6], 2048
    $region41: #{tpu_custom_call.1} parent=1 // pred_fallthru
      _
    %p71 = scmp.eq.s32.totalorder 0, 0
    // Predicated region
    $region42: #{tpu_custom_call.1} parent=1 // pred_check
      %p72 = pneg %p71
    $region43: #{tpu_custom_call.1} parent=1 // pred_check_branch
      %74 = sbr.rel (%p72) target = $region45
    $region44: #{tpu_custom_call.1} parent=1 // pred_region
      %75 = vst [vmem:[#allocation8] sm:$0x1] -inf
      %76 = vst [vmem:[#allocation9] sm:$0x1] 0.0
    $region45: #{tpu_custom_call.1} parent=1 // pred_fallthru
      _
    %v77 = vld [vmem:[%s0] sm:$0xff]
    %v78 = vld [vmem:[%s0 + $0x8] sm:$0xff]
    %v79 = vld [vmem:[%s0 + $0x10] sm:$0xff]
    %v80 = vld [vmem:[%s0 + $0x18] sm:$0xff]
    %v81 = vld [vmem:[#allocation5] sm:$0xff]
    %v82 = vld [vmem:[#allocation5 + $0x8] sm:$0xff]
    %v83 = vld [vmem:[#allocation5 + $0x10] sm:$0xff]
    %v84 = vld [vmem:[#allocation5 + $0x18] sm:$0xff]
    %v85 = vld [vmem:[#allocation5 + $0x20] sm:$0xff]
    %v86 = vld [vmem:[#allocation5 + $0x28] sm:$0xff]
    %v87 = vld [vmem:[#allocation5 + $0x30] sm:$0xff]
    %v88 = vld [vmem:[#allocation5 + $0x38] sm:$0xff]
    %v89 = vld [vmem:[#allocation5 + $0x40] sm:$0xff]
    %v90 = vld [vmem:[#allocation5 + $0x48] sm:$0xff]
    %v91 = vld [vmem:[#allocation5 + $0x50] sm:$0xff]
    %v92 = vld [vmem:[#allocation5 + $0x58] sm:$0xff]
    %v93 = vld [vmem:[#allocation5 + $0x60] sm:$0xff]
    %v94 = vld [vmem:[#allocation5 + $0x68] sm:$0xff]
    %v95 = vld [vmem:[#allocation5 + $0x70] sm:$0xff]
    %v96 = vld [vmem:[#allocation5 + $0x78] sm:$0xff]
    %v97 = vld [vmem:[%s4] sm:$0x1]
    %v99 = vlaneseq
    %v100 = vshrl.u32 %v99, 7
    %v101 = vsub.s32 0, %v100
    %v102 = vrot.slane %v97, %v101
    %104 = vmatprep.subr.mxu0 0.0
    %105 = vmatpush1.msra.mxu0 %v81
    %106 = vmatprep.subr.mxu0 0.0
    %107 = vmatpush1.msra.mxu0 %v82
    %108 = vmatprep.subr.mxu0 0.0
    %109 = vmatpush1.msra.mxu0 %v83
    %110 = vmatprep.subr.mxu0 0.0
    %111 = vmatpush1.msra.mxu0 %v84
    %112 = vmatprep.subr.mxu0 0.0
    %113 = vmatpush1.msra.mxu0 %v85
    %114 = vmatprep.subr.mxu0 0.0
    %115 = vmatpush1.msra.mxu0 %v86
    %116 = vmatprep.subr.mxu0 0.0
    %117 = vmatpush1.msra.mxu0 %v87
    %118 = vmatprep.subr.mxu0 0.0
    %119 = vmatpush1.msra.mxu0 %v88
    %120 = vmatprep.subr.mxu0 0.0
    %121 = vmatpush1.msra.mxu0 %v89
    %122 = vmatprep.subr.mxu0 0.0
    %123 = vmatpush1.msra.mxu0 %v90
    %124 = vmatprep.subr.mxu0 0.0
    %125 = vmatpush1.msra.mxu0 %v91
    %126 = vmatprep.subr.mxu0 0.0
    %127 = vmatpush1.msra.mxu0 %v92
    %128 = vmatprep.subr.mxu0 0.0
    %129 = vmatpush1.msra.mxu0 %v93
    %130 = vmatprep.subr.mxu0 0.0
    %131 = vmatpush1.msra.mxu0 %v94
    %132 = vmatprep.subr.mxu0 0.0
    %133 = vmatpush1.msra.mxu0 %v95
    %134 = vmatprep.subr.mxu0 0.0
    %135 = vmatpush1.msra.mxu0 %v96
    %136 = vmatprep.subr.mxu0 0.0
    %137 = vmatpush1.msra.mxu0 0.0
    %138 = vmatprep.subr.mxu0 0.0
    %139 = vmatpush1.msra.mxu0 0.0
    %140 = vmatprep.subr.mxu0 0.0
    %141 = vmatpush1.msra.mxu0 0.0
    %142 = vmatprep.subr.mxu0 0.0
    %143 = vmatpush1.msra.mxu0 0.0
    %144 = vmatprep.subr.mxu0 0.0
    %145 = vmatpush1.msra.mxu0 0.0
    %146 = vmatprep.subr.mxu0 0.0
    %147 = vmatpush1.msra.mxu0 0.0
    %148 = vmatprep.subr.mxu0 0.0
    %149 = vmatpush1.msra.mxu0 0.0
    %150 = vmatprep.subr.mxu0 0.0
    %151 = vmatpush1.msra.mxu0 0.0
    %152 = vmatprep.subr.mxu0 0.0
    %153 = vmatpush1.msra.mxu0 0.0
    %154 = vmatprep.subr.mxu0 0.0
    %155 = vmatpush1.msra.mxu0 0.0
    %156 = vmatprep.subr.mxu0 0.0
    %157 = vmatpush1.msra.mxu0 0.0
    %158 = vmatprep.subr.mxu0 0.0
    %159 = vmatpush1.msra.mxu0 0.0
    %160 = vmatprep.subr.mxu0 0.0
    %161 = vmatpush1.msra.mxu0 0.0
    %162 = vmatprep.subr.mxu0 0.0
    %163 = vmatpush1.msra.mxu0 0.0
    %164 = vmatprep.subr.mxu0 0.0
    %165 = vmatpush1.msra.mxu0 0.0
    %166 = vmatprep.subr.mxu0 0.0
    %167 = vmatpush1.msra.mxu0 0.0
    %168 = vmatprep.mubr.f32.mxu0 0.0
    %169 = vmatmul.mubr.f32.gmra.mrb[0].mxu0 %v77
    %v170 = vpop.f32.mrb[0].mxu0
    %v171 = vadd.f32 %v102, %v170
    %v172 = vpop.f32.mrb[0].mxu0
    %173 = vmatprep.mubr.f32.mxu0 0.0
    %174 = vmatmul.mubr.f32.gmra.mrb[0].mxu0 %v78
    %v175 = vpop.f32.mrb[0].mxu0
    %v176 = vadd.f32 %v102, %v175
    %v177 = vpop.f32.mrb[0].mxu0
    %178 = vmatprep.mubr.f32.mxu0 0.0
    %179 = vmatmul.mubr.f32.gmra.mrb[0].mxu0 %v79
    %v180 = vpop.f32.mrb[0].mxu0
    %v181 = vadd.f32 %v102, %v180
    %v182 = vpop.f32.mrb[0].mxu0
    %183 = vmatprep.mubr.f32.mxu0 0.0
    %184 = vmatmul.mubr.f32.gmra.mrb[0].mxu0 %v80
    %v185 = vpop.f32.mrb[0].mxu0
    %v186 = vadd.f32 %v102, %v185
    %v187 = vpop.f32.mrb[0].mxu0
    %188 = vdwg.mxu0
    %v189 = vld [vmem:[#allocation2] sm:$0xff]
    %v190 = vld [vmem:[#allocation2 + $0x8] sm:$0xff]
    %v191 = vld [vmem:[#allocation2 + $0x10] sm:$0xff]
    %v192 = vld [vmem:[#allocation2 + $0x18] sm:$0xff]
    %v193 = vld [vmem:[#allocation7] sm:$0xff]
    %v194 = vld [vmem:[#allocation7 + $0x8] sm:$0xff]
    %v195 = vld [vmem:[#allocation7 + $0x10] sm:$0xff]
    %v196 = vld [vmem:[#allocation7 + $0x18] sm:$0xff]
    %v197 = vld [vmem:[#allocation7 + $0x20] sm:$0xff]
    %v198 = vld [vmem:[#allocation7 + $0x28] sm:$0xff]
    %v199 = vld [vmem:[#allocation7 + $0x30] sm:$0xff]
    %v200 = vld [vmem:[#allocation7 + $0x38] sm:$0xff]
    %v201 = vld [vmem:[#allocation7 + $0x40] sm:$0xff]
    %v202 = vld [vmem:[#allocation7 + $0x48] sm:$0xff]
    %v203 = vld [vmem:[#allocation7 + $0x50] sm:$0xff]
    %v204 = vld [vmem:[#allocation7 + $0x58] sm:$0xff]
    %v205 = vld [vmem:[#allocation7 + $0x60] sm:$0xff]
    %v206 = vld [vmem:[#allocation7 + $0x68] sm:$0xff]
    %v207 = vld [vmem:[#allocation7 + $0x70] sm:$0xff]
    %v208 = vld [vmem:[#allocation7 + $0x78] sm:$0xff]
    %v209 = vld [vmem:[%s6] sm:$0x1]
    %v211 = vlaneseq
    %v212 = vshrl.u32 %v211, 7
    %v213 = vsub.s32 0, %v212
    %v214 = vrot.slane %v209, %v213
    %216 = vmatprep.subr.mxu0 0.0
    %217 = vmatpush1.msra.mxu0 %v193
    %218 = vmatprep.subr.mxu0 0.0
    %219 = vmatpush1.msra.mxu0 %v194
    %220 = vmatprep.subr.mxu0 0.0
    %221 = vmatpush1.msra.mxu0 %v195
    %222 = vmatprep.subr.mxu0 0.0
    %223 = vmatpush1.msra.mxu0 %v196
    %224 = vmatprep.subr.mxu0 0.0
    %225 = vmatpush1.msra.mxu0 %v197
    %226 = vmatprep.subr.mxu0 0.0
    %227 = vmatpush1.msra.mxu0 %v198
    %228 = vmatprep.subr.mxu0 0.0
    %229 = vmatpush1.msra.mxu0 %v199
    %230 = vmatprep.subr.mxu0 0.0
    %231 = vmatpush1.msra.mxu0 %v200
    %232 = vmatprep.subr.mxu0 0.0
    %233 = vmatpush1.msra.mxu0 %v201
    %234 = vmatprep.subr.mxu0 0.0
    %235 = vmatpush1.msra.mxu0 %v202
    %236 = vmatprep.subr.mxu0 0.0
    %237 = vmatpush1.msra.mxu0 %v203
    %238 = vmatprep.subr.mxu0 0.0
    %239 = vmatpush1.msra.mxu0 %v204
    %240 = vmatprep.subr.mxu0 0.0
    %241 = vmatpush1.msra.mxu0 %v205
    %242 = vmatprep.subr.mxu0 0.0
    %243 = vmatpush1.msra.mxu0 %v206
    %244 = vmatprep.subr.mxu0 0.0
    %245 = vmatpush1.msra.mxu0 %v207
    %246 = vmatprep.subr.mxu0 0.0
    %247 = vmatpush1.msra.mxu0 %v208
    %248 = vmatprep.subr.mxu0 0.0
    %249 = vmatpush1.msra.mxu0 0.0
    %250 = vmatprep.subr.mxu0 0.0
    %251 = vmatpush1.msra.mxu0 0.0
    %252 = vmatprep.subr.mxu0 0.0
    %253 = vmatpush1.msra.mxu0 0.0
    %254 = vmatprep.subr.mxu0 0.0
    %255 = vmatpush1.msra.mxu0 0.0
    %256 = vmatprep.subr.mxu0 0.0
    %257 = vmatpush1.msra.mxu0 0.0
    %258 = vmatprep.subr.mxu0 0.0
    %259 = vmatpush1.msra.mxu0 0.0
    %260 = vmatprep.subr.mxu0 0.0
    %261 = vmatpush1.msra.mxu0 0.0
    %262 = vmatprep.subr.mxu0 0.0
    %263 = vmatpush1.msra.mxu0 0.0
    %264 = vmatprep.subr.mxu0 0.0
    %265 = vmatpush1.msra.mxu0 0.0
    %266 = vmatprep.subr.mxu0 0.0
    %267 = vmatpush1.msra.mxu0 0.0
    %268 = vmatprep.subr.mxu0 0.0
    %269 = vmatpush1.msra.mxu0 0.0
    %270 = vmatprep.subr.mxu0 0.0
    %271 = vmatpush1.msra.mxu0 0.0
    %272 = vmatprep.subr.mxu0 0.0
    %273 = vmatpush1.msra.mxu0 0.0
    %274 = vmatprep.subr.mxu0 0.0
    %275 = vmatpush1.msra.mxu0 0.0
    %276 = vmatprep.subr.mxu0 0.0
    %277 = vmatpush1.msra.mxu0 0.0
    %278 = vmatprep.subr.mxu0 0.0
    %279 = vmatpush1.msra.mxu0 0.0
    %280 = vmatprep.mubr.f32.mxu0 0.0
    %281 = vmatmul.mubr.f32.gmra.mrb[0].mxu0 %v189
    %v282 = vpop.f32.mrb[0].mxu0
    %v283 = vadd.f32 %v214, %v282
    %v284 = vpop.f32.mrb[0].mxu0
    %285 = vmatprep.mubr.f32.mxu0 0.0
    %286 = vmatmul.mubr.f32.gmra.mrb[0].mxu0 %v190
    %v287 = vpop.f32.mrb[0].mxu0
    %v288 = vadd.f32 %v214, %v287
    %v289 = vpop.f32.mrb[0].mxu0
    %290 = vmatprep.mubr.f32.mxu0 0.0
    %291 = vmatmul.mubr.f32.gmra.mrb[0].mxu0 %v191
    %v292 = vpop.f32.mrb[0].mxu0
    %v293 = vadd.f32 %v214, %v292
    %v294 = vpop.f32.mrb[0].mxu0
    %295 = vmatprep.mubr.f32.mxu0 0.0
    %296 = vmatmul.mubr.f32.gmra.mrb[0].mxu0 %v192
    %v297 = vpop.f32.mrb[0].mxu0
    %v298 = vadd.f32 %v214, %v297
    %v299 = vpop.f32.mrb[0].mxu0
    %300 = vdwg.mxu0
    %v301 = vmul.f32 %v171, %v283
    %v302 = vmul.f32 %v176, %v288
    %v303 = vmul.f32 %v181, %v293
    %v304 = vmul.f32 %v186, %v298
    %305 = vadd.xlane.f32.xlu0 %v301
    %v306 = vpop.xlane.xlu0 %305
    %307 = vadd.xlane.f32.xlu0 %v302
    %v308 = vpop.xlane.xlu0 %307
    %309 = vadd.xlane.f32.xlu0 %v303
    %v310 = vpop.xlane.xlu0 %309
    %311 = vadd.xlane.f32.xlu0 %v304
    %v312 = vpop.xlane.xlu0 %311
    %v313 = vlaneseq
    %v314 = vand.u32 %v313, 127
    %v315 = vld [vmem:[%s2] sm:$0xff]
    %v316 = vld [vmem:[%s2 + $0x8] sm:$0xff]
    %v317 = vld [vmem:[%s2 + $0x10] sm:$0xff]
    %v318 = vld [vmem:[%s2 + $0x18] sm:$0xff]
    %319 = vset.pattern.permute.xlu0 0
    %320 = vperm.xlu0 %319, %v315
    %v321 = vpop.permute.xlu0 %320
    %322 = vset.pattern.permute.xlu0 0
    %323 = vperm.xlu0 %322, %v316
    %v324 = vpop.permute.xlu0 %323
    %325 = vset.pattern.permute.xlu0 0
    %326 = vperm.xlu0 %325, %v317
    %v327 = vpop.permute.xlu0 %326
    %328 = vset.pattern.permute.xlu0 0
    %329 = vperm.xlu0 %328, %v318
    %v330 = vpop.permute.xlu0 %329
    %vm331 = vcmp.eq.s32.totalorder %v321, %v314
    %vm332 = vcmp.eq.s32.totalorder %v324, %v314
    %vm333 = vcmp.eq.s32.totalorder %v327, %v314
    %vm334 = vcmp.eq.s32.totalorder %v330, %v314
    %v335 = vsel %vm331, %v306, -inf
    %v336 = vsel %vm332, %v308, -inf
    %v337 = vsel %vm333, %v310, -inf
    %v338 = vsel %vm334, %v312, -inf
    %v339 = vmax.f32 %v335, %v336
    %v340 = vmax.f32 %v337, %v338
    %v341 = vmax.f32 %v339, %v340
    %v342 = vrot.slane %v341, 4
    %v343 = vmax.f32 %v341, %v342
    %v344 = vrot.slane %v343, 2
    %v345 = vmax.f32 %v343, %v344
    %v346 = vrot.slane %v345, 1
    %v347 = vmax.f32 %v345, %v346
    %v348 = vld [vmem:[#allocation8] sm:$0x1]
    %v349 = vmax.f32 %v348, %v347
    %vm350 = vcmp.eq.f32.partialorder %v348, -inf
    %v351 = vsub.f32 %v348, %v349
    %v352 = vmul.f32 %v351, 1.442695
    %v353 = vpow.pop %v352
    %v354 = vsel %vm350, 0.0, %v353
    %v356 = vlaneseq
    %v357 = vshrl.u32 %v356, 7
    %v358 = vsub.s32 0, %v357
    %v359 = vrot.slane %v349, %v358
    %v361 = vsel %vm331, %v359, 0.0
    %v362 = vsel %vm332, %v359, 0.0
    %v363 = vsel %vm333, %v359, 0.0
    %v364 = vsel %vm334, %v359, 0.0
    %365 = vadd.xlane.f32.xlu0 %v361
    %v366 = vpop.xlane.xlu0 %365
    %367 = vadd.xlane.f32.xlu0 %v362
    %v368 = vpop.xlane.xlu0 %367
    %369 = vadd.xlane.f32.xlu0 %v363
    %v370 = vpop.xlane.xlu0 %369
    %371 = vadd.xlane.f32.xlu0 %v364
    %v372 = vpop.xlane.xlu0 %371
    %v373 = vsub.f32 %v306, %v366
    %v374 = vsub.f32 %v308, %v368
    %v375 = vsub.f32 %v310, %v370
    %v376 = vsub.f32 %v312, %v372
    %v377 = vmul.f32 %v373, 1.442695
    %v378 = vpow.pop %v377
    %v379 = vmul.f32 %v374, 1.442695
    %v380 = vpow.pop %v379
    %v381 = vmul.f32 %v375, 1.442695
    %v382 = vpow.pop %v381
    %v383 = vmul.f32 %v376, 1.442695
    %v384 = vpow.pop %v383
    %v385 = vsel %vm331, %v378, 0.0
    %v386 = vsel %vm332, %v380, 0.0
    %v387 = vsel %vm333, %v382, 0.0
    %v388 = vsel %vm334, %v384, 0.0
    %v389 = vadd.f32 %v385, %v386
    %v390 = vadd.f32 %v389, %v387
    %v391 = vadd.f32 %v390, %v388
    %v392 = vrot.slane %v391, 4
    %v393 = vadd.f32 %v391, %v392
    %v394 = vrot.slane %v393, 2
    %v395 = vadd.f32 %v393, %v394
    %v396 = vrot.slane %v395, 1
    %v397 = vadd.f32 %v395, %v396
    %v398 = vld [vmem:[#allocation9] sm:$0x1]
    %v399 = vmul.f32 %v354, %v398
    %v400 = vadd.f32 %v399, %v397
    %401 = vst [vmem:[#allocation9] sm:$0x1] %v400
    %402 = vst [vmem:[#allocation8] sm:$0x1] %v349
    // Predicated region
    $region46: #{tpu_custom_call.1} parent=1 // pred_check
      _
    $region47: #{tpu_custom_call.1} parent=1 // pred_check_branch
      %404 = sbr.rel (0) target = $region49
    $region48: #{tpu_custom_call.1} parent=1 // pred_region
      %s406 = ssub.s32 16, 16
      %407 = vsyncadd [#allocation4], %s406
      %s409 = sshll.u32 [#allocation8], 4
      %s410 = int_to_ptr.vmem [resolvable:$true] %s409
      %412 = dma.vmem_to_hbm [thread:$0]  %s410, 16, %s7, [#allocation4]
    $region49: #{tpu_custom_call.1} parent=1 // pred_fallthru
      _
    // Predicated region
    $region50: #{tpu_custom_call.1} parent=1 // pred_check
      _
    $region51: #{tpu_custom_call.1} parent=1 // pred_check_branch
      %414 = sbr.rel (0) target = $region53
    $region52: #{tpu_custom_call.1} parent=1 // pred_region
      %s416 = ssub.s32 16, 16
      %417 = vsyncadd [#allocation10], %s416
      %s419 = sshll.u32 [#allocation9], 4
      %s420 = int_to_ptr.vmem [resolvable:$true] %s419
      %422 = dma.vmem_to_hbm [thread:$0]  %s420, 16, %s8, [#allocation10]
    $region53: #{tpu_custom_call.1} parent=1 // pred_fallthru
      _
    // Predicated region
    $region54: #{tpu_custom_call.1} parent=1 // pred_check
      _
    $region55: #{tpu_custom_call.1} parent=1 // pred_check_branch
      %424 = sbr.rel (0) target = $region57
    $region56: #{tpu_custom_call.1} parent=1 // pred_region
      %425 = dma.done [#allocation4], 16
    $region57: #{tpu_custom_call.1} parent=1 // pred_fallthru
      _
    // Predicated region
    $region58: #{tpu_custom_call.1} parent=1 // pred_check
      _
    $region59: #{tpu_custom_call.1} parent=1 // pred_check_branch
      %427 = sbr.rel (0) target = $region61
    $region60: #{tpu_custom_call.1} parent=1 // pred_region
      %428 = dma.done [#allocation10], 16
    $region61: #{tpu_custom_call.1} parent=1 // pred_fallthru
      _
    %429 = vsyncpa [#allocation3], 1
    %430 = vsyncpa [#allocation6], 1
    %431 = vsyncpa [#allocation4], 1
    %432 = vsyncpa [#allocation10], 1

</llo_original>
